<compile_context>
chip_gen: v5e
topology: v5e:2x2
jax: 0.10.0
libtpu: 0.0.40
codegen_flags: <defaults>
</compile_context>

<pallas_src>
import functools

import jax
import jax.numpy as jnp
from jax.experimental import pallas as pl
from jax.experimental.pallas import tpu as pltpu


def _round_up(a, m):
    return (a + m - 1) // m * m


def _conv1d_kernel(x_ref, xh_ref, w_ref, b_ref, o_ref, *, K, dilation, tile_L):
    """One (batch, L-tile) grid point, K > 1 (has halo).

    x_ref  : [1, C_in_p, tile_L]    current time tile of the padded signal
    xh_ref : [1, C_in_p, halo_pad]  the halo_pad columns right after the tile
    w_ref  : [C_out_p, K*C_in_p]    packed weight-normed weight (tap-major rows)
    b_ref  : [C_out_p, 1]           bias (f32)
    o_ref  : [1, C_out_p, tile_L]
    """
    x_cur = x_ref[0]  # [C_in_p, tile_L]

    # im2col stack [K*C_in_p, tile_L]; each tap is a lane-shifted view of
    # (current tile ++ halo).  All offsets are static Python ints.
    parts = []
    for k in range(K):
        off = k * dilation
        if off == 0:
            parts.append(x_cur)
        elif off == tile_L:
            parts.append(xh_ref[0, :, :off])
        else:
            parts.append(
                jnp.concatenate([x_cur[:, off:], xh_ref[0, :, :off]], axis=1)
            )
    stk = jnp.concatenate(parts, axis=0)

    # Single MXU matmul, f32 accumulation.
    acc = jnp.dot(w_ref[...], stk, preferred_element_type=jnp.float32)
    o_ref[0, :, :] = (acc + b_ref[...]).astype(o_ref.dtype)


def _conv1d_kernel_nohalo(x_ref, w_ref, b_ref, o_ref):
    """kernel_size == 1 (no halo): plain channel-mixing matmul per tile."""
    acc = jnp.dot(w_ref[...], x_ref[0], preferred_element_type=jnp.float32)
    o_ref[0, :, :] = (acc + b_ref[...]).astype(o_ref.dtype)


def causal_conv1d(x, weight_v, weight_g, bias, *, dilation=1, causal=True,
                  base_tile=2048, compute_dtype=None):
    """Forward pass of the flow_wavenet `Conv` module.

    x        : [N, C_in, L]
    weight_v : [C_out, C_in, K]  weight_norm "v"
    weight_g : [C_out]           weight_norm "g"
    bias     : [C_out]
    returns  : [N, C_out, L] for causal=True (PyTorch pads both sides by
               dilation*(K-1) then drops the trailing pad columns), otherwise
               [N, C_out, L + 2*pad - dilation*(K-1)].
    """
    N, C_in, L = x.shape
    C_out, _, K = weight_v.shape
    out_dtype = x.dtype
    cd = compute_dtype if compute_dtype is not None else x.dtype

    # weight_norm (dim=0): W = g * v / ||v||, norm over (in, k) per out channel.
    # Tiny [C_out, C_in, K] tensor -> computed in plain JAX outside the kernel.
    v32 = weight_v.astype(jnp.float32)
    v_norm = jnp.sqrt(jnp.sum(v32 ** 2, axis=(1, 2), keepdims=True))
    weight = weight_g.astype(jnp.float32)[:, None, None] * v32 / v_norm

    halo = dilation * (K - 1)
    pad = halo if causal else halo // 2
    out_len = L if causal else L + 2 * pad - halo

    # --- tiling / padding geometry (all static Python ints) -----------------
    C_in_p = _round_up(C_in, 8)
    C_out_p = _round_up(C_out, 8)
    itemsize = jnp.dtype(cd).itemsize
    halo_pad = _round_up(halo, 128) if halo > 0 else 0

    # Cap the tile so estimated VMEM (double-buffered I/O + im2col stack + acc)
    # stays well under the default scoped limit even for wide channel counts.
    per_col = ((2 * C_in_p + K * C_in_p) * itemsize
               + 2 * C_out_p * jnp.dtype(out_dtype).itemsize
               + C_out_p * 4)
    budget = 16 * 1024 * 1024
    max_tile = max(128, (budget // max(per_col, 1)) // 128 * 128)
    tile_L = min(base_tile, max_tile, _round_up(out_len, 128))
    if halo_pad > 0:
        tile_L = _round_up(tile_L, halo_pad)
    else:
        tile_L = _round_up(tile_L, 128)
    num_tiles = pl.cdiv(out_len, tile_L)
    out_len_pad = num_tiles * tile_L
    ratio = tile_L // halo_pad if halo_pad > 0 else 1  # halo blocks per L tile

    # Pad input: zero channels up to C_in_p, causal/symmetric left pad, and
    # enough right zeros so every tile (plus its halo block) is in-bounds.
    needed_len = out_len_pad + halo_pad
    pad_left = pad
    pad_right = needed_len - pad_left - L
    x_p = jnp.pad(x, ((0, 0), (0, C_in_p - C_in), (pad_left, pad_right)))
    x_p = x_p.astype(cd)

    # Packed weight [C_out_p, K*C_in_p], rows ordered (tap0 ch..., tap1 ch...).
    w_pad = jnp.pad(weight, ((0, C_out_p - C_out), (0, C_in_p - C_in), (0, 0)))
    w_packed = jnp.transpose(w_pad, (0, 2, 1)).reshape(C_out_p, K * C_in_p)
    w_packed = w_packed.astype(cd)
    b2 = jnp.pad(bias, (0, C_out_p - C_out)).reshape(C_out_p, 1).astype(jnp.float32)

    cost = pl.CostEstimate(
        flops=2 * N * C_out_p * (K * C_in_p) * out_len_pad,
        transcendentals=0,
        bytes_accessed=(x_p.size * itemsize + w_packed.size * itemsize
                        + b2.size * 4
                        + N * C_out_p * out_len_pad * jnp.dtype(out_dtype).itemsize),
    )
    cparams = pltpu.CompilerParams(dimension_semantics=("parallel", "parallel"))
    out_shape = jax.ShapeDtypeStruct((N, C_out_p, out_len_pad), out_dtype)

    w_spec = pl.BlockSpec((C_out_p, K * C_in_p), lambda n, l: (0, 0))
    b_spec = pl.BlockSpec((C_out_p, 1), lambda n, l: (0, 0))
    x_spec = pl.BlockSpec((1, C_in_p, tile_L), lambda n, l: (n, 0, l))
    o_spec = pl.BlockSpec((1, C_out_p, tile_L), lambda n, l: (n, 0, l))

    if halo > 0:
        kernel = functools.partial(_conv1d_kernel, K=K, dilation=dilation,
                                   tile_L=tile_L)
        halo_spec = pl.BlockSpec((1, C_in_p, halo_pad),
                                 lambda n, l: (n, 0, (l + 1) * ratio))
        out_p = pl.pallas_call(
            kernel,
            out_shape=out_shape,
            grid_spec=pltpu.PrefetchScalarGridSpec(
                num_scalar_prefetch=0,
                grid=(N, num_tiles),
                in_specs=[x_spec, halo_spec, w_spec, b_spec],
                out_specs=o_spec,
            ),
            compiler_params=cparams,
            cost_estimate=cost,
        )(x_p, x_p, w_packed, b2)
    else:
        out_p = pl.pallas_call(
            _conv1d_kernel_nohalo,
            out_shape=out_shape,
            grid_spec=pltpu.PrefetchScalarGridSpec(
                num_scalar_prefetch=0,
                grid=(N, num_tiles),
                in_specs=[x_spec, w_spec, b_spec],
                out_specs=o_spec,
            ),
            compiler_params=cparams,
            cost_estimate=cost,
        )(x_p, w_packed, b2)

    return out_p[:, :C_out, :out_len]


def _reference(x, weight_v, weight_g, bias, *, dilation, causal):
    """Pure-JAX reference mirroring the PyTorch module."""
    C_out, _, K = weight_v.shape
    v_norm = jnp.sqrt(jnp.sum(weight_v ** 2, axis=(1, 2), keepdims=True))
    weight = weight_g[:, None, None] * weight_v / v_norm
    pad = dilation * (K - 1) if causal else dilation * (K - 1) // 2
    y = jax.lax.conv_general_dilated(
        x, weight, window_strides=(1,), padding=[(pad, pad)],
        rhs_dilation=(dilation,), dimension_numbers=("NCH", "OIH", "NCH"),
    ) + bias[None, :, None]
    if causal and pad != 0:
        y = y[:, :, :-pad]
    return y


if __name__ == "__main__":
    key = jax.random.PRNGKey(0)
    k_x, k_v, k_g, k_b = jax.random.split(key, 4)

    # Small shapes consistent with the module's forward: NCL signal tensor.
    N, C_in, C_out, L = 2, 4, 8, 16
    K, dilation = 3, 2

    x = jax.random.normal(k_x, (N, C_in, L), dtype=jnp.float32)
    weight_v = jax.random.normal(k_v, (C_out, C_in, K), dtype=jnp.float32)
    weight_g = jnp.abs(jax.random.normal(k_g, (C_out,), dtype=jnp.float32)) + 0.5
    bias = jax.random.normal(k_b, (C_out,), dtype=jnp.float32) * 0.1

    # Causal path, f32 compute.
    out = causal_conv1d(x, weight_v, weight_g, bias, dilation=dilation, causal=True)
    out = jax.block_until_ready(out)
    ref = _reference(x, weight_v, weight_g, bias, dilation=dilation, causal=True)
    assert out.shape == (N, C_out, L), out.shape
    assert jnp.max(jnp.abs(out - ref)) < 1e-4, float(jnp.max(jnp.abs(out - ref)))

    # Causal path, bf16 MXU operands / f32 accumulation (bandwidth-optimized).
    out_bf16 = causal_conv1d(x, weight_v, weight_g, bias, dilation=dilation,
                             causal=True, compute_dtype=jnp.bfloat16)
    out_bf16 = jax.block_until_ready(out_bf16)
    assert out_bf16.shape == (N, C_out, L)
    assert jnp.max(jnp.abs(out_bf16 - ref)) < 5e-2, float(jnp.max(jnp.abs(out_bf16 - ref)))

    # Non-causal path.
    out_nc = causal_conv1d(x, weight_v, weight_g, bias, dilation=dilation, causal=False)
    out_nc = jax.block_until_ready(out_nc)
    ref_nc = _reference(x, weight_v, weight_g, bias, dilation=dilation, causal=False)
    assert out_nc.shape == ref_nc.shape, (out_nc.shape, ref_nc.shape)
    assert jnp.max(jnp.abs(out_nc - ref_nc)) < 1e-4, float(jnp.max(jnp.abs(out_nc - ref_nc)))

    # kernel_size == 1 path (no halo input / no halo DMA).
    w1_v = jax.random.normal(k_v, (C_out, C_in, 1), dtype=jnp.float32)
    out_k1 = causal_conv1d(x, w1_v, weight_g, bias, dilation=1, causal=True)
    out_k1 = jax.block_until_ready(out_k1)
    ref_k1 = _reference(x, w1_v, weight_g, bias, dilation=1, causal=True)
    assert out_k1.shape == ref_k1.shape
    assert jnp.max(jnp.abs(out_k1 - ref_k1)) < 1e-4, float(jnp.max(jnp.abs(out_k1 - ref_k1)))

    print("KERNEL_OK")
</pallas_src>

<mosaic_0001>
module attributes {stable_mosaic.version = 11 : i64} {
  func.func @_conv1d_kernel(%arg0: i32, %arg1: i32, %arg2: memref<1x8x128xf32, #tpu.memory_space<vmem>>, %arg3: memref<1x8x128xf32, #tpu.memory_space<vmem>>, %arg4: memref<8x24xf32, #tpu.memory_space<vmem>>, %arg5: memref<8x1xf32, #tpu.memory_space<vmem>>, %arg6: memref<1x8x128xf32, #tpu.memory_space<vmem>>) attributes {dimension_semantics = [#tpu.dimension_semantics<parallel>, #tpu.dimension_semantics<parallel>], iteration_bounds = array<i64: 2, 1>, scalar_prefetch = 0 : i64, scratch_operands = 0 : i64, tpu.core_type = #tpu.core_type<tc>, window_params = [{transform_indices = @transform_0, window_bounds = array<i64: 1, 8, 128>}, {transform_indices = @transform_1, window_bounds = array<i64: 1, 8, 128>}, {pipeline_mode = #tpu.pipeline_mode<synchronous>, transform_indices = @transform_2, window_bounds = array<i64: 8, 24>}, {pipeline_mode = #tpu.pipeline_mode<synchronous>, transform_indices = @transform_3, window_bounds = array<i64: 8, 1>}, {transform_indices = @transform_4, window_bounds = array<i64: 1, 8, 128>}]} {
    %c0 = arith.constant 0 : index
    %c0_0 = arith.constant 0 : index
    %c0_1 = arith.constant 0 : index
    %0 = vector.load %arg2[%c0, %c0_0, %c0_1] : memref<1x8x128xf32, #tpu.memory_space<vmem>>, vector<1x8x128xf32>
    %1 = vector.shape_cast %0 : vector<1x8x128xf32> to vector<8x128xf32>
    %2 = vector.extract_strided_slice %1 {offsets = [0, 2], sizes = [8, 126], strides = [1, 1]} : vector<8x128xf32> to vector<8x126xf32>
    %c0_2 = arith.constant 0 : index
    %c0_3 = arith.constant 0 : index
    %c0_4 = arith.constant 0 : index
    %3 = vector.load %arg3[%c0_2, %c0_3, %c0_4] : memref<1x8x128xf32, #tpu.memory_space<vmem>>, vector<1x8x2xf32>
    %4 = vector.shape_cast %3 : vector<1x8x2xf32> to vector<8x2xf32>
    %5 = tpu.concatenate %2, %4 in 1 : vector<8x126xf32>, vector<8x2xf32> -> vector<8x128xf32>
    %6 = vector.extract_strided_slice %1 {offsets = [0, 4], sizes = [8, 124], strides = [1, 1]} : vector<8x128xf32> to vector<8x124xf32>
    %c0_5 = arith.constant 0 : index
    %c0_6 = arith.constant 0 : index
    %c0_7 = arith.constant 0 : index
    %7 = vector.load %arg3[%c0_5, %c0_6, %c0_7] : memref<1x8x128xf32, #tpu.memory_space<vmem>>, vector<1x8x4xf32>
    %8 = vector.shape_cast %7 : vector<1x8x4xf32> to vector<8x4xf32>
    %9 = tpu.concatenate %6, %8 in 1 : vector<8x124xf32>, vector<8x4xf32> -> vector<8x128xf32>
    %10 = tpu.concatenate %1, %5, %9 in 0 : vector<8x128xf32>, vector<8x128xf32>, vector<8x128xf32> -> vector<24x128xf32>
    %c0_8 = arith.constant 0 : index
    %c0_9 = arith.constant 0 : index
    %11 = vector.load %arg4[%c0_8, %c0_9] : memref<8x24xf32, #tpu.memory_space<vmem>>, vector<8x24xf32>
    %cst = arith.constant dense<0.000000e+00> : vector<8x128xf32>
    %12 = tpu.matmul %11, %10, %cst {dimension_numbers = #tpu.dot_dimension_numbers<[1], [0], [0], [1], [0, 0, 1, 1], [], []>} : vector<8x24xf32>, vector<24x128xf32>, vector<8x128xf32> -> vector<8x128xf32>
    %c0_10 = arith.constant 0 : index
    %c0_11 = arith.constant 0 : index
    %13 = vector.load %arg5[%c0_10, %c0_11] : memref<8x1xf32, #tpu.memory_space<vmem>>, vector<8x1xf32>
    %14 = vector.broadcast %13 : vector<8x1xf32> to vector<8x128xf32>
    %15 = arith.addf %12, %14 : vector<8x128xf32>
    %c0_12 = arith.constant 0 : index
    %c0_13 = arith.constant 0 : index
    %c0_14 = arith.constant 0 : index
    %16 = vector.load %arg6[%c0_12, %c0_13, %c0_14] : memref<1x8x128xf32, #tpu.memory_space<vmem>>, vector<1x8x128xf32>
    %17 = vector.shape_cast %16 : vector<1x8x128xf32> to vector<8x128xf32>
    %18 = vector.shape_cast %15 : vector<8x128xf32> to vector<1x8x128xf32>
    tpu.vector_store %arg6[%c0_12, %c0_13, %c0_14], %18 {strides = array<i32>} : memref<1x8x128xf32, #tpu.memory_space<vmem>>, vector<1x8x128xf32>,
    return
  }
  func.func @transform_0(%arg0: i32, %arg1: i32) -> (i32, i32, i32) {
    %c0_i32 = arith.constant 0 : i32
    %c0_i32_0 = arith.constant 0 : i32
    return %arg0, %c0_i32, %arg1 : i32, i32, i32
  }
  func.func @transform_1(%arg0: i32, %arg1: i32) -> (i32, i32, i32) {
    %c1_i32 = arith.constant 1 : i32
    %0 = arith.addi %arg1, %c1_i32 : i32
    %c1_i32_0 = arith.constant 1 : i32
    %1 = arith.muli %0, %c1_i32_0 : i32
    %c0_i32 = arith.constant 0 : i32
    %c0_i32_1 = arith.constant 0 : i32
    return %arg0, %c0_i32, %1 : i32, i32, i32
  }
  func.func @transform_2(%arg0: i32, %arg1: i32) -> (i32, i32) {
    %c0_i32 = arith.constant 0 : i32
    %c0_i32_0 = arith.constant 0 : i32
    %c0_i32_1 = arith.constant 0 : i32
    return %c0_i32, %c0_i32_0 : i32, i32
  }
  func.func @transform_3(%arg0: i32, %arg1: i32) -> (i32, i32) {
    %c0_i32 = arith.constant 0 : i32
    %c0_i32_0 = arith.constant 0 : i32
    %c0_i32_1 = arith.constant 0 : i32
    return %c0_i32, %c0_i32_0 : i32, i32
  }
  func.func @transform_4(%arg0: i32, %arg1: i32) -> (i32, i32, i32) {
    %c0_i32 = arith.constant 0 : i32
    %c0_i32_0 = arith.constant 0 : i32
    return %arg0, %c0_i32, %arg1 : i32, i32, i32
  }
}

</mosaic_0001>

<llo_original>
// kernel: tpu_custom_call.1
$region0: #{tpu_custom_call.1}
  #allocation0 [shape = 'u32[]', space=smem, size = 0x4, offset = 0x4, fixed_abs, tag = 'smem constant byte address 0x4 - core index']
  #allocation1 [shape = 'u32[72,128]{1,0:T(1,128)}', space=vmem, size = 0x9000, scoped, tag = 'internal scratch']
  %s0 = inlined_call_operand.hbm [shape: f32[2,8,256], index: 0, kind: input, shape index: {}]
  %s1 = inlined_call_operand.hbm [shape: f32[2,8,256], index: 1, kind: input, shape index: {}]
  %s2 = inlined_call_operand.vmem [shape: f32[8,24], index: 2, kind: input, shape index: {}]
  %s3 = inlined_call_operand.vmem [shape: f32[8,1], index: 3, kind: input, shape index: {}]
  %s4 = inlined_call_operand.hbm [shape: f32[2,8,128], index: 4, kind: output, shape index: {}]
  %s5 = sld [smem:[#allocation0]]
  $region57: #{tpu_custom_call.1} parent=0
    _
  %s7 = ssub.s32 1, %s5
  %s8 = scalar_select 0, %s7, %s5
  $region1: #{tpu_custom_call.1} parent=0
    #allocation2 [shape = 'u8[8192]{0}', space=vmem, size = 0x2000, scoped, tag = 'input window, operand 0']
    #allocation3 [shape = 's32[2]{0}', space=sflag, size = 0x8, scoped, tag = 'scoped memory for tpu_custom_call.1']
    #allocation4 [shape = 's32[2]{0}', space=sflag, size = 0x8, scoped, tag = 'scoped memory for tpu_custom_call.1']
    #allocation5 [shape = 'u8[8192]{0}', space=vmem, size = 0x2000, scoped, tag = 'input window, operand 1']
    #allocation6 [shape = 's32[2]{0}', space=sflag, size = 0x8, scoped, tag = 'scoped memory for tpu_custom_call.1']
    #allocation7 [shape = 'u8[8192]{0}', space=vmem, size = 0x2000, scoped, tag = 'output window, operand 0']
    %9 = vsyncpa [#allocation3], 0
    %s10 = scalar_lea.sflag [#allocation3], 1
    %11 = vsyncpa %s10, 0
    %12 = vsyncpa [#allocation6], 0
    %s13 = scalar_lea.sflag [#allocation6], 1
    %14 = vsyncpa %s13, 0
    %15 = vsyncpa [#allocation4], 0
    %s16 = scalar_lea.sflag [#allocation4], 1
    %17 = vsyncpa %s16, 0
    loop: start=0, step=1, limit=4
    $region2: #{tpu_custom_call.1} parent=1 // loop_pre_header
      _
    $region3: #{tpu_custom_call.1} parent=1 // loop_header
      %s19 = sphi 0, %s23
      %p20 = scmp.ge.s32.totalorder %s19, 4
      %s26 = sphi 0, %s38
      %s27 = sphi 0, %s34
      %s28 = sphi 0, %s26
      %s29 = sphi 0, %s27
      %s30 = sphi 0, %s28
      %s31 = sphi 0, %s29
      %s43 = sphi 0, %s45
      %s46 = sphi 0, %s43
      %s47 = sphi 0, %s46
      %s63 = sphi 0, %s47
      %s73 = sphi 0, %s75
      %s76 = sphi 0, %s73
      %s77 = sphi 0, %s76
      %s93 = sphi 0, %s77
      %s97 = sphi 0, %s97
      %s99 = sphi 0, %s97
      %s100 = sphi 0, %s99
      %s114 = sphi 0, %s100
      %s118 = sphi 0, %s118
      %s120 = sphi 0, %s118
      %s121 = sphi 0, %s120
      %s135 = sphi 0, %s121
      %s143 = sphi 0, %s145
      %s146 = sphi 0, %s143
      %s147 = sphi 0, %s146
      %s163 = sphi 0, %s147
    $region4: #{tpu_custom_call.1} parent=1 // loop_header_branch
      %22 = sbr.rel (%p20) target = $region8
    $region5: #{tpu_custom_call.1} parent=1 // loop_body
      %s24 = ssub.s32 %s19, 1
      %s25 = ssub.s32 %s19, 2
      %s32 = sadd.s32 1, %s27
      %p33 = scmp.ge.s32.totalorder %s32, 1
      %s34 = scalar_select %p33, 0, %s32
      %s35 = sadd.s32 1, %s26
      %s36 = scalar_select %p33, %s35, %s26
      %p37 = scmp.ge.s32.totalorder %s36, 2
      %s38 = scalar_select %p37, 0, %s36
      %s39 = ssub.s32 %s26, %s38
      %s40 = ssub.s32 %s27, %s34
      %s41 = sor.u32 %s39, %s40
      %p42 = scmp.eq.s32.totalorder %s41, 0
      %s44 = sadd.s32 %s43, 1
      %s45 = scalar_select %p42, %s43, %s44
      %p48 = pneg %p42
      %p49 = scmp.eq.s32.totalorder %s19, 1
      %p50 = por %p48, %p49
      %p51 = scmp.ne.s32.totalorder %s43, %s46
      %p52 = scmp.eq.s32.totalorder %s19, 0
      %p53 = por %p51, %p52
      %p54 = scmp.ne.s32.totalorder %s43, %s46
      %p55 = scmp.eq.s32.totalorder %s24, 1
      %p56 = por %p54, %p55
      %p57 = scmp.ne.s32.totalorder %s46, %s47
      %p58 = scmp.eq.s32.totalorder %s24, 0
      %p59 = por %p57, %p58
      %p60 = scmp.ne.s32.totalorder %s46, %s47
      %p61 = scmp.eq.s32.totalorder %s25, 1
      %p62 = por %p60, %p61
      %p64 = scmp.ne.s32.totalorder %s47, %s63
      %p65 = scmp.eq.s32.totalorder %s25, 0
      %p66 = por %p64, %p65
      %s67 = sadd.s32 %s27, 1
      %s68 = sadd.s32 %s34, 1
      %s69 = ssub.s32 %s26, %s38
      %s70 = ssub.s32 %s67, %s68
      %s71 = sor.u32 %s69, %s70
      %p72 = scmp.eq.s32.totalorder %s71, 0
      %s74 = sadd.s32 %s73, 1
      %s75 = scalar_select %p72, %s73, %s74
      %p78 = pneg %p72
      %p79 = scmp.eq.s32.totalorder %s19, 1
      %p80 = por %p78, %p79
      %p81 = scmp.ne.s32.totalorder %s73, %s76
      %p82 = scmp.eq.s32.totalorder %s19, 0
      %p83 = por %p81, %p82
      %p84 = scmp.ne.s32.totalorder %s73, %s76
      %p85 = scmp.eq.s32.totalorder %s24, 1
      %p86 = por %p84, %p85
      %p87 = scmp.ne.s32.totalorder %s76, %s77
      %p88 = scmp.eq.s32.totalorder %s24, 0
      %p89 = por %p87, %p88
      %p90 = scmp.ne.s32.totalorder %s76, %s77
      %p91 = scmp.eq.s32.totalorder %s25, 1
      %p92 = por %p90, %p91
      %p94 = scmp.ne.s32.totalorder %s77, %s93
      %p95 = scmp.eq.s32.totalorder %s25, 0
      %p96 = por %p94, %p95
      %s98 = sadd.s32 %s97, 1
      %p101 = scmp.eq.s32.totalorder %s19, 1
      %p102 = scmp.ne.s32.totalorder %s97, %s99
      %p103 = scmp.eq.s32.totalorder %s19, 0
      %p104 = por %p102, %p103
      %p105 = scmp.ne.s32.totalorder %s97, %s99
      %p106 = scmp.eq.s32.totalorder %s24, 1
      %p107 = por %p105, %p106
      %p108 = scmp.ne.s32.totalorder %s99, %s100
      %p109 = scmp.eq.s32.totalorder %s24, 0
      %p110 = por %p108, %p109
      %p111 = scmp.ne.s32.totalorder %s99, %s100
      %p112 = scmp.eq.s32.totalorder %s25, 1
      %p113 = por %p111, %p112
      %p115 = scmp.ne.s32.totalorder %s100, %s114
      %p116 = scmp.eq.s32.totalorder %s25, 0
      %p117 = por %p115, %p116
      %s119 = sadd.s32 %s118, 1
      %p122 = scmp.eq.s32.totalorder %s19, 1
      %p123 = scmp.ne.s32.totalorder %s118, %s120
      %p124 = scmp.eq.s32.totalorder %s19, 0
      %p125 = por %p123, %p124
      %p126 = scmp.ne.s32.totalorder %s118, %s120
      %p127 = scmp.eq.s32.totalorder %s24, 1
      %p128 = por %p126, %p127
      %p129 = scmp.ne.s32.totalorder %s120, %s121
      %p130 = scmp.eq.s32.totalorder %s24, 0
      %p131 = por %p129, %p130
      %p132 = scmp.ne.s32.totalorder %s120, %s121
      %p133 = scmp.eq.s32.totalorder %s25, 1
      %p134 = por %p132, %p133
      %p136 = scmp.ne.s32.totalorder %s121, %s135
      %p137 = scmp.eq.s32.totalorder %s25, 0
      %p138 = por %p136, %p137
      %s139 = ssub.s32 %s26, %s38
      %s140 = ssub.s32 %s27, %s34
      %s141 = sor.u32 %s139, %s140
      %p142 = scmp.eq.s32.totalorder %s141, 0
      %s144 = sadd.s32 %s143, 1
      %s145 = scalar_select %p142, %s143, %s144
      %p148 = pneg %p142
      %p149 = scmp.eq.s32.totalorder %s19, 1
      %p150 = por %p148, %p149
      %p151 = scmp.ne.s32.totalorder %s143, %s146
      %p152 = scmp.eq.s32.totalorder %s19, 0
      %p153 = por %p151, %p152
      %p154 = scmp.ne.s32.totalorder %s143, %s146
      %p155 = scmp.eq.s32.totalorder %s24, 1
      %p156 = por %p154, %p155
      %p157 = scmp.ne.s32.totalorder %s146, %s147
      %p158 = scmp.eq.s32.totalorder %s24, 0
      %p159 = por %p157, %p158
      %p160 = scmp.ne.s32.totalorder %s146, %s147
      %p161 = scmp.eq.s32.totalorder %s25, 1
      %p162 = por %p160, %p161
      %p164 = scmp.ne.s32.totalorder %s147, %s163
      %p165 = scmp.eq.s32.totalorder %s25, 0
      %p166 = por %p164, %p165
      %p167 = scmp.le.s32.totalorder 1, %s19
      %p168 = scmp.lt.s32.totalorder %s19, 3
      %p169 = pnand %p167, %p168
      %p170 = pneg %p169
      // Predicated region
      $region9: #{tpu_custom_call.1} parent=5 // pred_check
        _
      $region10: #{tpu_custom_call.1} parent=5 // pred_check_branch
        %172 = sbr.rel (%p169) target = $region12
      $region11: #{tpu_custom_call.1} parent=5 // pred_region
        %s173 = ssub.s32 %s19, 1
        // Predicated region
        $region13: #{tpu_custom_call.1} parent=11 // pred_check
          %p174 = pneg %p110
        $region14: #{tpu_custom_call.1} parent=11 // pred_check_branch
          %176 = sbr.rel (%p174) target = $region16
        $region15: #{tpu_custom_call.1} parent=11 // pred_region
          _
        $region16: #{tpu_custom_call.1} parent=11 // pred_fallthru
          _
        // Predicated region
        $region17: #{tpu_custom_call.1} parent=11 // pred_check
          %p177 = pneg %p131
        $region18: #{tpu_custom_call.1} parent=11 // pred_check_branch
          %179 = sbr.rel (%p177) target = $region20
        $region19: #{tpu_custom_call.1} parent=11 // pred_region
          _
        $region20: #{tpu_custom_call.1} parent=11 // pred_fallthru
          _
      $region12: #{tpu_custom_call.1} parent=5 // pred_fallthru
        _
      %p180 = scmp.lt.s32.totalorder %s19, 2
      // Predicated region
      $region21: #{tpu_custom_call.1} parent=5 // pred_check
        %p181 = pneg %p180
      $region22: #{tpu_custom_call.1} parent=5 // pred_check_branch
        %183 = sbr.rel (%p181) target = $region24
      $region23: #{tpu_custom_call.1} parent=5 // pred_region
        // Predicated region
        $region25: #{tpu_custom_call.1} parent=23 // pred_check
          %p184 = pneg %p53
        $region26: #{tpu_custom_call.1} parent=23 // pred_check_branch
          %186 = sbr.rel (%p184) target = $region28
        $region27: #{tpu_custom_call.1} parent=23 // pred_region
          %s187 = sand.u32 %s43, 1
          %s188 = scalar_lea.sflag [#allocation3], %s187
          %s189 = sand.u32 %s43, 1
          %s190 = smul.addr %s189, 8
          %s191 = scalar_lea.vmem [#allocation2], %s190
          %193 = vsyncadd %s188, 0
          %s194 = smul.addr %s26, 2
          %s195 = sadd.s32 %s27, %s194
          %s196 = smul.addr %s195, 8
          %s197 = scalar_lea.hbm %s0, %s196
          %s199 = sshll.u32 %s197, 4
          %s200 = int_to_ptr.hbm [resolvable:$true] %s199
          %s201 = sshll.u32 %s191, 4
          %s202 = int_to_ptr.vmem [resolvable:$true] %s201
          %204 = dma.hbm_to_vmem [thread:$0]  %s200, 128, %s202, %s188
        $region28: #{tpu_custom_call.1} parent=23 // pred_fallthru
          _
        // Predicated region
        $region29: #{tpu_custom_call.1} parent=23 // pred_check
          %p205 = pneg %p83
        $region30: #{tpu_custom_call.1} parent=23 // pred_check_branch
          %207 = sbr.rel (%p205) target = $region32
        $region31: #{tpu_custom_call.1} parent=23 // pred_region
          %s208 = sand.u32 %s73, 1
          %s209 = scalar_lea.sflag [#allocation6], %s208
          %s210 = sand.u32 %s73, 1
          %s211 = smul.addr %s210, 8
          %s212 = scalar_lea.vmem [#allocation5], %s211
          %s213 = sadd.s32 %s27, 1
          %215 = vsyncadd %s209, 0
          %s216 = smul.addr %s26, 2
          %s217 = sadd.s32 %s213, %s216
          %s218 = smul.addr %s217, 8
          %s219 = scalar_lea.hbm %s1, %s218
          %s221 = sshll.u32 %s219, 4
          %s222 = int_to_ptr.hbm [resolvable:$true] %s221
          %s223 = sshll.u32 %s212, 4
          %s224 = int_to_ptr.vmem [resolvable:$true] %s223
          %226 = dma.hbm_to_vmem [thread:$0]  %s222, 128, %s224, %s209
        $region32: #{tpu_custom_call.1} parent=23 // pred_fallthru
          _
      $region24: #{tpu_custom_call.1} parent=5 // pred_fallthru
        _
      %p227 = scmp.le.s32.totalorder 1, %s19
      %p228 = scmp.lt.s32.totalorder %s19, 3
      %p229 = pnand %p227, %p228
      %p230 = pneg %p229
      // Predicated region
      $region33: #{tpu_custom_call.1} parent=5 // pred_check
        _
      $region34: #{tpu_custom_call.1} parent=5 // pred_check_branch
        %232 = sbr.rel (%p229) target = $region36
      $region35: #{tpu_custom_call.1} parent=5 // pred_region
        %s233 = ssub.s32 %s19, 1
        %s234 = sand.u32 %s46, 1
        %s235 = scalar_lea.sflag [#allocation3], %s234
        %s236 = sand.u32 %s46, 1
        %s237 = smul.addr %s236, 8
        %s238 = scalar_lea.vmem [#allocation2], %s237
        // Predicated region
        $region37: #{tpu_custom_call.1} parent=35 // pred_check
          %p239 = pneg %p59
        $region38: #{tpu_custom_call.1} parent=35 // pred_check_branch
          %241 = sbr.rel (%p239) target = $region40
        $region39: #{tpu_custom_call.1} parent=35 // pred_region
          %243 = dma.done %s235, 128
        $region40: #{tpu_custom_call.1} parent=35 // pred_fallthru
          _
        %s244 = sand.u32 %s76, 1
        %s245 = scalar_lea.sflag [#allocation6], %s244
        %s246 = sand.u32 %s76, 1
        %s247 = smul.addr %s246, 8
        %s248 = scalar_lea.vmem [#allocation5], %s247
        // Predicated region
        $region41: #{tpu_custom_call.1} parent=35 // pred_check
          %p249 = pneg %p89
        $region42: #{tpu_custom_call.1} parent=35 // pred_check_branch
          %251 = sbr.rel (%p249) target = $region44
        $region43: #{tpu_custom_call.1} parent=35 // pred_region
          %253 = dma.done %s245, 128
        $region44: #{tpu_custom_call.1} parent=35 // pred_fallthru
          _
        %s254 = sand.u32 %s46, 1
        %s255 = scalar_lea.sflag [#allocation3], %s254
        %s256 = sand.u32 %s46, 1
        %s257 = smul.addr %s256, 8
        %s258 = scalar_lea.vmem [#allocation2], %s257
        %p259 = pneg %p59
        %p260 = pneg %p56
        %s261 = sand.u32 %s76, 1
        %s262 = scalar_lea.sflag [#allocation6], %s261
        %s263 = sand.u32 %s76, 1
        %s264 = smul.addr %s263, 8
        %s265 = scalar_lea.vmem [#allocation5], %s264
        %p266 = pneg %p89
        %p267 = pneg %p86
        %p268 = pneg %p110
        %p269 = pneg %p107
        %p270 = pneg %p131
        %p271 = pneg %p128
        %p272 = pneg %p159
        %p273 = pneg %p156
        %s274 = sand.u32 %s146, 1
        %s275 = scalar_lea.sflag [#allocation4], %s274
        %s276 = sand.u32 %s146, 1
        %s277 = smul.addr %s276, 8
        %s278 = scalar_lea.vmem [#allocation7], %s277
        %s279 = sadd.s32 %s29, 1
        %v280 = vld [vmem:[%s238] sm:$0xff]
        %v281 = vld [vmem:[%s248] sm:$0xff]
        %283 = vrot.lane.b32.xlu0 %v280, 126
        %v284 = vpop.permute.xlu0 %283
        %287 = vrot.lane.b32.xlu0 %v281, 126
        %v288 = vpop.permute.xlu0 %287
        %vm290 = vcmask 1031168
        %v291 = vsel %vm290, %v284, %v288
        %292 = vrot.lane.b32.xlu0 %v280, 124
        %v293 = vpop.permute.xlu0 %292
        %295 = vrot.lane.b32.xlu0 %v281, 124
        %v296 = vpop.permute.xlu0 %295
        %vm298 = vcmask 1014784
        %v299 = vsel %vm298, %v293, %v296
        %v300 = vld [vmem:[%s2] sm:$0xff]
        %v301 = vld [vmem:[%s3] sm:$0xff]
        %303 = vset.pattern.permute.xlu0 0
        %304 = vperm.xlu0 %303, %v301
        %v305 = vpop.permute.xlu0 %304
        %vm307 = vcmask 195584
        %v309 = vsel %vm307, %v300, 0
        %311 = vmatpush.msra.mxu0 0.0
        %312 = vmatpush.msra.mxu0 0.0
        %313 = vmatpush.msra.mxu0 0.0
        %314 = vmatpush.msra.mxu0 0.0
        %315 = vmatpush.msra.mxu0 0.0
        %316 = vmatpush.msra.mxu0 0.0
        %317 = vmatpush.msra.mxu0 0.0
        %318 = vmatpush.msra.mxu0 0.0
        %319 = vmatpush.msra.mxu0 0.0
        %320 = vmatpush.msra.mxu0 0.0
        %321 = vmatpush.msra.mxu0 0.0
        %322 = vmatpush.msra.mxu0 0.0
        %323 = vmatpush.msra.mxu0 0.0
        %324 = vmatpush.msra.mxu0 %v299
        %325 = vmatpush.msra.mxu0 %v291
        %326 = vmatpush.msra.mxu0 %v280
        %327 = vmatmul.f32.gmra.mxu0 %v309
        %v328 = vpop.f32.mrf.mxu0
        %v329 = vadd.f32 %v305, %v328
        %330 = vdwg.mxu0
        %331 = vst [vmem:[%s278] sm:$0xff] %v329
        %s332 = sand.u32 %s146, 1
        %s333 = scalar_lea.sflag [#allocation4], %s332
        %s334 = sand.u32 %s146, 1
        %s335 = smul.addr %s334, 8
        %s336 = scalar_lea.vmem [#allocation7], %s335
        // Predicated region
        $region45: #{tpu_custom_call.1} parent=35 // pred_check
          %p337 = pneg %p156
        $region46: #{tpu_custom_call.1} parent=35 // pred_check_branch
          %339 = sbr.rel (%p337) target = $region48
        $region47: #{tpu_custom_call.1} parent=35 // pred_region
          %341 = vsyncadd %s333, 0
          %s342 = sadd.s32 %s29, %s28
          %s343 = smul.addr %s342, 8
          %s344 = scalar_lea.hbm %s4, %s343
          %s346 = sshll.u32 %s336, 4
          %s347 = int_to_ptr.vmem [resolvable:$true] %s346
          %s348 = sshll.u32 %s344, 4
          %s349 = int_to_ptr.hbm [resolvable:$true] %s348
          %351 = dma.vmem_to_hbm [thread:$0]  %s347, 128, %s349, %s333
        $region48: #{tpu_custom_call.1} parent=35 // pred_fallthru
          _
      $region36: #{tpu_custom_call.1} parent=5 // pred_fallthru
        _
      %p352 = scmp.le.s32.totalorder 2, %s19
      // Predicated region
      $region49: #{tpu_custom_call.1} parent=5 // pred_check
        %p353 = pneg %p352
      $region50: #{tpu_custom_call.1} parent=5 // pred_check_branch
        %355 = sbr.rel (%p353) target = $region52
      $region51: #{tpu_custom_call.1} parent=5 // pred_region
        %s356 = ssub.s32 %s19, 2
        // Predicated region
        $region53: #{tpu_custom_call.1} parent=51 // pred_check
          %p357 = pneg %p162
        $region54: #{tpu_custom_call.1} parent=51 // pred_check_branch
          %359 = sbr.rel (%p357) target = $region56
        $region55: #{tpu_custom_call.1} parent=51 // pred_region
          %s360 = sand.u32 %s147, 1
          %s361 = scalar_lea.sflag [#allocation4], %s360
          %s362 = sand.u32 %s147, 1
          %s363 = smul.addr %s362, 8
          %s364 = scalar_lea.vmem [#allocation7], %s363
          %366 = dma.done %s361, 128
        $region56: #{tpu_custom_call.1} parent=51 // pred_fallthru
          _
      $region52: #{tpu_custom_call.1} parent=5 // pred_fallthru
        _
    $region6: #{tpu_custom_call.1} parent=1 // loop_footer
      %s23 = sadd.s32 1, %s19
    $region7: #{tpu_custom_call.1} parent=1 // loop_footer_branch
      %18 = sbr.rel target = $region3
    $region8: #{tpu_custom_call.1} parent=1 // loop_exit
      _
    %367 = vsyncpa [#allocation3], 1
    %s368 = scalar_lea.sflag [#allocation3], 1
    %369 = vsyncpa %s368, 1
    %370 = vsyncpa [#allocation6], 1
    %s371 = scalar_lea.sflag [#allocation6], 1
    %372 = vsyncpa %s371, 1
    %373 = vsyncpa [#allocation4], 1
    %s374 = scalar_lea.sflag [#allocation4], 1
    %375 = vsyncpa %s374, 1

</llo_original>
